<compile_context>
chip_gen: v5e
topology: v5e:2x2
jax: 0.10.0
libtpu: 0.0.40
codegen_flags: <defaults>
</compile_context>

<pallas_src>
import math

import jax
import jax.numpy as jnp
from jax.experimental import pallas as pl
from jax.experimental.pallas import tpu as pltpu

_LANE = 128  # vreg lane width (same on v5e/v6e/v7x)


def _sublane_for(dtype):
    # Packed hardware tile rows: 8 (f32), 16 (bf16), 32 (int8/fp8).
    return max(8, 32 // jnp.dtype(dtype).itemsize)


def _gen_params():
    """Returns (target_block_bytes, vmem_limit_bytes_or_None) per TPU generation."""
    try:
        kind = jax.devices()[0].device_kind.lower()
    except Exception:  # pragma: no cover - defensive
        kind = ""
    if "v7" in kind:
        return 8 * 1024 * 1024, 48 << 20   # 3.2 TB/s HBM; 8 MiB x 4 bufs = 32 of 64 MiB
    if "v6" in kind:
        return 4 * 1024 * 1024, 64 << 20   # 128 MiB VMEM, ample headroom
    # v5e / v5 / v4 / unknown: stay well under the 16 MiB scoped-VMEM default.
    return 2 * 1024 * 1024, None


def _round_up(n, m):
    return ((n + m - 1) // m) * m


def _scaling_kernel(x_ref, log_scale_ref, o_ref):
    # exp in f32 on the EUP (free slot in this memory-bound kernel; also avoids
    # bf16 precision loss), broadcast-multiply on the VPU, cast back on store.
    scale = jnp.exp(log_scale_ref[...].astype(jnp.float32))
    o_ref[...] = (x_ref[...].astype(jnp.float32) * scale).astype(o_ref.dtype)


def _pick_row_block(rows, lane_block, itemsize, sublane, target_bytes, total_bytes):
    """Largest sublane-aligned row count within the per-block byte budget.

    For mid/large inputs, guarantees at least 2 row blocks so a 'parallel' grid
    axis exists for megacore sharding (v7x has 2 TensorCores)."""
    tb = max(1, target_bytes // (lane_block * itemsize))
    if tb >= rows:
        if total_bytes >= (2 << 20) and rows >= 2 * sublane:
            half = _round_up(pl.cdiv(rows, 2), sublane)
            return min(half, rows)
        return rows
    tb = max(sublane, (tb // sublane) * sublane)
    return min(tb, rows)


def _scaling_2d(x2d, scale_row):
    """x2d: (rows, lanes); scale_row: (1, lanes).  Returns x2d * exp(scale_row)."""
    rows, lanes = x2d.shape
    itemsize = jnp.dtype(x2d.dtype).itemsize
    sublane = _sublane_for(x2d.dtype)
    target_bytes, vmem_limit = _gen_params()
    total_bytes = rows * lanes * itemsize
    row_slab_bytes = sublane * lanes * itemsize

    if row_slab_bytes <= target_bytes or lanes % _LANE != 0:
        # Full-lane blocks: contiguous HBM DMAs, 1-D grid, and the scale block
        # index is constant -> scale tile DMA'd once and kept resident.
        tn = lanes
        tb = _pick_row_block(rows, tn, itemsize, sublane, target_bytes, total_bytes)
        grid = (pl.cdiv(rows, tb),)
        return pl.pallas_call(
            _scaling_kernel,
            out_shape=jax.ShapeDtypeStruct((rows, lanes), x2d.dtype),
            grid=grid,
            in_specs=[
                pl.BlockSpec((tb, tn), lambda i: (i, 0)),
                pl.BlockSpec((1, tn), lambda i: (0, 0)),
            ],
            out_specs=pl.BlockSpec((tb, tn), lambda i: (i, 0)),
            compiler_params=pltpu.CompilerParams(
                dimension_semantics=("parallel",),
                vmem_limit_bytes=vmem_limit,
            ),
        )(x2d, scale_row)

    # Very wide rows: tile lanes with the largest 128-multiple divisor of
    # `lanes` that fits the budget (no ragged/masked lane edge).  Grid ordered
    # (lane_blocks, row_blocks) so the scale block index (0, j) is constant
    # across the inner (row) axis and stays resident.
    max_tn = max(_LANE, (target_bytes // (sublane * itemsize)) // _LANE * _LANE)
    tn = _LANE
    d = _LANE
    while d <= min(lanes, max_tn):
        if lanes % d == 0:
            tn = d
        d += _LANE
    tb = _pick_row_block(rows, tn, itemsize, sublane, target_bytes, total_bytes)
    grid = (lanes // tn, pl.cdiv(rows, tb))
    return pl.pallas_call(
        _scaling_kernel,
        out_shape=jax.ShapeDtypeStruct((rows, lanes), x2d.dtype),
        grid=grid,
        in_specs=[
            pl.BlockSpec((tb, tn), lambda j, i: (i, j)),
            pl.BlockSpec((1, tn), lambda j, i: (0, j)),
        ],
        out_specs=pl.BlockSpec((tb, tn), lambda j, i: (i, j)),
        compiler_params=pltpu.CompilerParams(
            dimension_semantics=("parallel", "parallel"),
            vmem_limit_bytes=vmem_limit,
        ),
    )(x2d, scale_row)


def scaling_layer(x, log_scale):
    """ScalingLayer forward: y = x * exp(log_scale).

    x: (..., input_dim); log_scale: (input_dim,)."""
    input_dim = x.shape[-1]
    assert log_scale.shape == (input_dim,)
    orig_shape = x.shape
    batch = 1
    for d in orig_shape[:-1]:
        batch *= d
    x2d = x.reshape(batch, input_dim)

    # Lane-dense repack: fold g rows together so the lane axis becomes
    # lcm(input_dim, 128), a multiple of 128 -> unmasked full-vreg stores.
    # jnp.reshape is value-semantic (logical row-major), so this is layout-safe.
    g = math.lcm(input_dim, _LANE) // input_dim
    if g > 1 and batch % g == 0:
        rows = batch // g
        lanes = g * input_dim
        x2d = x2d.reshape(rows, lanes)
        scale_row = jnp.tile(log_scale, g).reshape(1, lanes)
        out = _scaling_2d(x2d, scale_row)
        return out.reshape(orig_shape)

    out = _scaling_2d(x2d, log_scale.reshape(1, input_dim))
    return out.reshape(orig_shape)


if __name__ == "__main__":
    key = jax.random.PRNGKey(0)
    kx, ks, kx2, ks2, kx3, ks3 = jax.random.split(key, 6)

    # 1) Small shape consistent with the module (exercises the lcm lane-dense
    #    repack path: input_dim=32 -> g=4 -> (2, 128) lane-dense slab).
    batch, input_dim = 8, 32
    x = jax.random.normal(kx, (batch, input_dim), dtype=jnp.float32)
    log_scale = 0.1 * jax.random.normal(ks, (input_dim,), dtype=jnp.float32)

    out = scaling_layer(x, log_scale)
    jax.block_until_ready(out)
    ref = x * jnp.exp(log_scale)
    assert out.shape == ref.shape
    assert jnp.allclose(out, ref, atol=1e-6, rtol=1e-6), "mismatch (lane-dense path)"

    # 2) General (lanes already a multiple of 128) path.
    batch2, input_dim2 = 16, 256
    x2 = jax.random.normal(kx2, (batch2, input_dim2), dtype=jnp.float32)
    log_scale2 = 0.1 * jax.random.normal(ks2, (input_dim2,), dtype=jnp.float32)

    out2 = scaling_layer(x2, log_scale2)
    jax.block_until_ready(out2)
    ref2 = x2 * jnp.exp(log_scale2)
    assert jnp.allclose(out2, ref2, atol=1e-6, rtol=1e-6), "mismatch (general path)"

    # 3) bf16 input with non-128-divisor feature dim (input_dim=48 -> g=8),
    #    exercising dtype-aware sublane alignment + f32 exp precision.
    batch3, input_dim3 = 32, 48
    x3 = jax.random.normal(kx3, (batch3, input_dim3), dtype=jnp.float32).astype(jnp.bfloat16)
    log_scale3 = (0.1 * jax.random.normal(ks3, (input_dim3,), dtype=jnp.float32)).astype(jnp.bfloat16)

    out3 = scaling_layer(x3, log_scale3)
    jax.block_until_ready(out3)
    ref3 = (x3.astype(jnp.float32) * jnp.exp(log_scale3.astype(jnp.float32))).astype(jnp.bfloat16)
    assert jnp.allclose(out3.astype(jnp.float32), ref3.astype(jnp.float32),
                        atol=2e-2, rtol=2e-2), "mismatch (bf16 path)"

    print("KERNEL_OK")
</pallas_src>

<mosaic_0001>
module attributes {stable_mosaic.version = 11 : i64} {
  func.func @_scaling_kernel(%arg0: i32, %arg1: memref<2x128xf32, #tpu.memory_space<vmem>>, %arg2: memref<1x128xf32, #tpu.memory_space<vmem>>, %arg3: memref<2x128xf32, #tpu.memory_space<vmem>>) attributes {dimension_semantics = [#tpu.dimension_semantics<parallel>], iteration_bounds = array<i64: 1>, scalar_prefetch = 0 : i64, scratch_operands = 0 : i64, tpu.core_type = #tpu.core_type<tc>, window_params = [{transform_indices = @transform_0, window_bounds = array<i64: 2, 128>}, {pipeline_mode = #tpu.pipeline_mode<synchronous>, transform_indices = @transform_1, window_bounds = array<i64: 1, 128>}, {transform_indices = @transform_2, window_bounds = array<i64: 2, 128>}]} {
    %c0 = arith.constant 0 : index
    %c0_0 = arith.constant 0 : index
    %0 = vector.load %arg2[%c0, %c0_0] : memref<1x128xf32, #tpu.memory_space<vmem>>, vector<1x128xf32>
    %1 = math.exp %0 : vector<1x128xf32>
    %c0_1 = arith.constant 0 : index
    %c0_2 = arith.constant 0 : index
    %2 = vector.load %arg1[%c0_1, %c0_2] : memref<2x128xf32, #tpu.memory_space<vmem>>, vector<2x128xf32>
    %3 = vector.broadcast %1 : vector<1x128xf32> to vector<2x128xf32>
    %4 = arith.mulf %2, %3 : vector<2x128xf32>
    %c0_3 = arith.constant 0 : index
    %c0_4 = arith.constant 0 : index
    %5 = vector.load %arg3[%c0_3, %c0_4] : memref<2x128xf32, #tpu.memory_space<vmem>>, vector<2x128xf32>
    tpu.vector_store %arg3[%c0_3, %c0_4], %4 {strides = array<i32>} : memref<2x128xf32, #tpu.memory_space<vmem>>, vector<2x128xf32>,
    return
  }
  func.func @transform_0(%arg0: i32) -> (i32, i32) {
    %c0_i32 = arith.constant 0 : i32
    %c0_i32_0 = arith.constant 0 : i32
    return %arg0, %c0_i32 : i32, i32
  }
  func.func @transform_1(%arg0: i32) -> (i32, i32) {
    %c0_i32 = arith.constant 0 : i32
    %c0_i32_0 = arith.constant 0 : i32
    %c0_i32_1 = arith.constant 0 : i32
    return %c0_i32, %c0_i32_0 : i32, i32
  }
  func.func @transform_2(%arg0: i32) -> (i32, i32) {
    %c0_i32 = arith.constant 0 : i32
    %c0_i32_0 = arith.constant 0 : i32
    return %arg0, %c0_i32 : i32, i32
  }
}

</mosaic_0001>

<llo_original>
// kernel: tpu_custom_call.1
$region0: #{tpu_custom_call.1}
  #allocation0 [shape = 'u32[]', space=smem, size = 0x4, offset = 0x4, fixed_abs, tag = 'smem constant byte address 0x4 - core index']
  #allocation1 [shape = 'u32[72,128]{1,0:T(1,128)}', space=vmem, size = 0x9000, scoped, tag = 'internal scratch']
  %s0 = inlined_call_operand.hbm [shape: f32[2,128], index: 0, kind: input, shape index: {}]
  %s1 = inlined_call_operand.hbm [shape: f32[1,128], index: 1, kind: input, shape index: {}]
  %s2 = inlined_call_operand.hbm [shape: f32[2,128], index: 2, kind: output, shape index: {}]
  %s3 = sld [smem:[#allocation0]]
  $region26: #{tpu_custom_call.1} parent=0
    _
  %s5 = ssub.s32 1, %s3
  %s6 = scalar_select 0, %s5, %s3
  $region1: #{tpu_custom_call.1} parent=0
    #allocation2 [shape = 'u8[1024]{0}', space=vmem, size = 0x400, scoped, tag = 'input window, operand 0, single buffered']
    #allocation3 [shape = 's32[1]{0}', space=sflag, size = 0x4, scoped, tag = 'scoped memory for tpu_custom_call.1']
    #allocation4 [shape = 's32[1]{0}', space=sflag, size = 0x4, scoped, tag = 'scoped memory for tpu_custom_call.1']
    #allocation5 [shape = 'u8[512]{0}', space=vmem, size = 0x400, scoped, tag = 'input window, operand 1, single buffered']
    #allocation6 [shape = 's32[1]{0}', space=sflag, size = 0x4, scoped, tag = 'scoped memory for tpu_custom_call.1']
    #allocation7 [shape = 'u8[1024]{0}', space=vmem, size = 0x400, scoped, tag = 'output window, operand 0, single buffered']
    %7 = vsyncpa [#allocation3], 0
    %8 = vsyncpa [#allocation6], 0
    %9 = vsyncpa [#allocation4], 0
    // Predicated region
    $region2: #{tpu_custom_call.1} parent=1 // pred_check
      _
    $region3: #{tpu_custom_call.1} parent=1 // pred_check_branch
      %11 = sbr.rel (0) target = $region5
    $region4: #{tpu_custom_call.1} parent=1 // pred_region
      %13 = vsyncadd [#allocation3], 0
      %s15 = sshll.u32 %s0, 4
      %s16 = int_to_ptr.hbm [resolvable:$true] %s15
      %s17 = sshll.u32 [#allocation2], 4
      %s18 = int_to_ptr.vmem [resolvable:$true] %s17
      %20 = dma.hbm_to_vmem [thread:$0]  %s16, 32, %s18, [#allocation3]
    $region5: #{tpu_custom_call.1} parent=1 // pred_fallthru
      _
    // Predicated region
    $region6: #{tpu_custom_call.1} parent=1 // pred_check
      _
    $region7: #{tpu_custom_call.1} parent=1 // pred_check_branch
      %22 = sbr.rel (0) target = $region9
    $region8: #{tpu_custom_call.1} parent=1 // pred_region
      %24 = vsyncadd [#allocation6], 0
      %s26 = sshll.u32 %s1, 4
      %s27 = int_to_ptr.hbm [resolvable:$true] %s26
      %s28 = sshll.u32 [#allocation5], 4
      %s29 = int_to_ptr.vmem [resolvable:$true] %s28
      %31 = dma.hbm_to_vmem [thread:$0]  %s27, 16, %s29, [#allocation6]
    $region9: #{tpu_custom_call.1} parent=1 // pred_fallthru
      _
    // Predicated region
    $region10: #{tpu_custom_call.1} parent=1 // pred_check
      _
    $region11: #{tpu_custom_call.1} parent=1 // pred_check_branch
      %33 = sbr.rel (0) target = $region13
    $region12: #{tpu_custom_call.1} parent=1 // pred_region
      %35 = dma.done [#allocation3], 32
    $region13: #{tpu_custom_call.1} parent=1 // pred_fallthru
      _
    // Predicated region
    $region14: #{tpu_custom_call.1} parent=1 // pred_check
      _
    $region15: #{tpu_custom_call.1} parent=1 // pred_check_branch
      %37 = sbr.rel (0) target = $region17
    $region16: #{tpu_custom_call.1} parent=1 // pred_region
      %39 = dma.done [#allocation6], 16
    $region17: #{tpu_custom_call.1} parent=1 // pred_fallthru
      _
    %v40 = vld [vmem:[#allocation5] sm:$0x1]
    %v41 = vmul.f32 %v40, 1.442695
    %v42 = vpow.pop %v41
    %v43 = vld [vmem:[#allocation2] sm:$0x3]
    %v45 = vperm.slane %v42, 0
    %v47 = vmul.f32 %v43, %v45
    %48 = vst [vmem:[#allocation7] sm:$0x3] %v47
    // Predicated region
    $region18: #{tpu_custom_call.1} parent=1 // pred_check
      _
    $region19: #{tpu_custom_call.1} parent=1 // pred_check_branch
      %50 = sbr.rel (0) target = $region21
    $region20: #{tpu_custom_call.1} parent=1 // pred_region
      %52 = vsyncadd [#allocation4], 0
      %s54 = sshll.u32 [#allocation7], 4
      %s55 = int_to_ptr.vmem [resolvable:$true] %s54
      %s56 = sshll.u32 %s2, 4
      %s57 = int_to_ptr.hbm [resolvable:$true] %s56
      %59 = dma.vmem_to_hbm [thread:$0]  %s55, 32, %s57, [#allocation4]
    $region21: #{tpu_custom_call.1} parent=1 // pred_fallthru
      _
    // Predicated region
    $region22: #{tpu_custom_call.1} parent=1 // pred_check
      _
    $region23: #{tpu_custom_call.1} parent=1 // pred_check_branch
      %61 = sbr.rel (0) target = $region25
    $region24: #{tpu_custom_call.1} parent=1 // pred_region
      %63 = dma.done [#allocation4], 32
    $region25: #{tpu_custom_call.1} parent=1 // pred_fallthru
      _
    %64 = vsyncpa [#allocation3], 1
    %65 = vsyncpa [#allocation6], 1
    %66 = vsyncpa [#allocation4], 1

</llo_original>
